<compile_context>
chip_gen: v6e
topology: v6e:2x2x1
jax: 0.10.0
libtpu: 0.0.40
codegen_flags: <defaults>
</compile_context>

<pallas_src>
import functools
import math

import jax
import jax.numpy as jnp
from jax.experimental import pallas as pl
from jax.experimental.pallas import tpu as pltpu


# --------------------------------------------------------------------------- #
# Kernel: pure streaming add of a (1, tf) PE strip onto a (tb, tf) x block.    #
# --------------------------------------------------------------------------- #
def _pe_add_kernel(x_ref, pe_ref, o_ref):
    # (tb, tf) + (1, tf) broadcast add, native dtype (mem-bound).
    o_ref[...] = x_ref[...] + pe_ref[...]
    # TODO(synk): dropout is p=0 in the reference config (identity); stochastic
    # dropout would use pltpu.prng_seed / pltpu.stateful_bernoulli here.


# --------------------------------------------------------------------------- #
# Tiling helpers                                                               #
# --------------------------------------------------------------------------- #
def _largest_divisor(n: int, cap: int, multiple: int) -> int:
    """Largest d <= cap with d % multiple == 0 and n % d == 0 (0 if none)."""
    best = 0
    d = multiple
    lim = min(n, cap)
    while d <= lim:
        if n % d == 0:
            best = d
        d += multiple
    return best


def _choose_tiles(batch: int, flat: int, itemsize: int,
                  max_flat_tile_elems: int, max_block_bytes: int):
    """Pick (tb, tf). `flat` is already a multiple of 128 (wrapper pads).

    tf: multiple of 128 dividing flat (or flat itself), capped by elems/bytes.
    tb: divisor of batch, preferring dtype-aware sublane multiples, sized so a
        (tb, tf) block never exceeds max_block_bytes.
    """
    sub = max(8, 32 // itemsize)  # sublane multiple: 8 f32, 16 bf16, 32 int8/fp8

    def pick_tf(cap_elems: int) -> int:
        cap_elems = max(128, cap_elems)
        if flat <= cap_elems:
            return flat
        tf = 128
        cand = 128
        while cand <= cap_elems:
            if flat % cand == 0:
                tf = cand
            cand += 128
        return tf

    tf = pick_tf(max_flat_tile_elems)
    # Ensure at least `sub` rows fit the byte budget: shrink tf, never blow the cap.
    if batch >= sub and tf * itemsize * sub > max_block_bytes:
        tf = pick_tf(max_block_bytes // (sub * itemsize))

    rows_cap = max(1, max_block_bytes // (tf * itemsize))
    if batch <= rows_cap:
        tb = batch
    else:
        tb = _largest_divisor(batch, rows_cap, sub)
        if tb == 0:
            tb = _largest_divisor(batch, rows_cap, 1)  # always >= 1
    return tb, tf


# --------------------------------------------------------------------------- #
# PE table (matches the PyTorch buffer construction)                           #
# --------------------------------------------------------------------------- #
def _make_pe(seq_len: int, d_model: int) -> jnp.ndarray:
    position = jnp.arange(seq_len, dtype=jnp.float32)[:, None]          # (S, 1)
    div_term = jnp.exp(jnp.arange(0, d_model, 2, dtype=jnp.float32)
                       * (-math.log(10000.0) / d_model))                # (ceil(D/2),)
    angles = position * div_term                                        # (S, ceil(D/2))
    pe = jnp.zeros((seq_len, d_model), dtype=jnp.float32)
    pe = pe.at[:, 0::2].set(jnp.sin(angles))
    pe = pe.at[:, 1::2].set(jnp.cos(angles)[:, : d_model // 2])
    return pe


# --------------------------------------------------------------------------- #
# Wrapper                                                                      #
# --------------------------------------------------------------------------- #
def positional_encoding_forward(x: jax.Array, *,
                                max_len: int = 5000,
                                max_flat_tile_elems: int = 256 * 1024,
                                max_block_bytes: int = 8 * 1024 * 1024,
                                vmem_limit_bytes: int = 48 * 1024 * 1024
                                ) -> jax.Array:
    """x: (B, S, D) with D == d_model. Returns x + PE[:S] (dropout p=0)."""
    B, S, D = x.shape
    assert S <= max_len, "sequence length exceeds max_len of the PE buffer"

    flat = S * D
    flat_pad = ((flat + 127) // 128) * 128           # lane-dense, unmasked stores

    # Layout plumbing in the wrapper (row-major reshape is free; pad is O(1%)).
    x2 = x.reshape(B, flat)
    pe_strip = _make_pe(S, D).reshape(1, flat).astype(x.dtype)
    if flat_pad != flat:
        x2 = jnp.pad(x2, ((0, 0), (0, flat_pad - flat)))
        pe_strip = jnp.pad(pe_strip, ((0, 0), (0, flat_pad - flat)))

    tb, tf = _choose_tiles(B, flat_pad, x.dtype.itemsize,
                           max_flat_tile_elems, max_block_bytes)
    n_f, n_b = flat_pad // tf, B // tb

    out = pl.pallas_call(
        _pe_add_kernel,
        out_shape=jax.ShapeDtypeStruct((B, flat_pad), x.dtype),
        grid=(n_f, n_b),
        in_specs=[
            pl.BlockSpec((tb, tf), lambda f, b: (b, f)),   # x block
            pl.BlockSpec((1, tf), lambda f, b: (0, f)),    # PE strip (const over b)
        ],
        out_specs=pl.BlockSpec((tb, tf), lambda f, b: (b, f)),
        compiler_params=pltpu.CompilerParams(
            # No cross-step state -> both axes independent (megacore-shardable).
            dimension_semantics=("parallel", "parallel"),
            vmem_limit_bytes=vmem_limit_bytes,
        ),
    )(x2, pe_strip)

    if flat_pad != flat:
        out = out[:, :flat]
    return out.reshape(B, S, D)


# --------------------------------------------------------------------------- #
# Plain-JAX reference (replica of the PyTorch module) for verification         #
# --------------------------------------------------------------------------- #
def _reference(x: jnp.ndarray, max_len: int = 5000) -> jnp.ndarray:
    B, S, D = x.shape
    pe = _make_pe(max_len, D)
    return x + pe[None, :S, :].astype(x.dtype)


if __name__ == "__main__":
    # Matches PositionalEncoding(20, dropout=0, max_len=5000) on a small
    # batch-first (B, S, d_model) input.
    key = jax.random.PRNGKey(0)
    x = jax.random.normal(key, (2, 8, 20), dtype=jnp.float32)

    out = jax.block_until_ready(positional_encoding_forward(x))
    ref = _reference(x)
    assert out.shape == ref.shape and out.dtype == ref.dtype
    assert float(jnp.max(jnp.abs(out - ref))) < 1e-5, "mismatch vs reference"

    # Second small shape that exercises flat-axis tiling, batch-row tiling and
    # PE-strip reuse across batch blocks (grid = (2, 2), block = (8, 512)).
    x2 = jax.random.normal(jax.random.PRNGKey(1), (16, 32, 32), dtype=jnp.float32)
    out2 = jax.block_until_ready(positional_encoding_forward(
        x2, max_flat_tile_elems=512, max_block_bytes=16 * 1024))
    ref2 = _reference(x2)
    assert float(jnp.max(jnp.abs(out2 - ref2))) < 1e-5, "mismatch vs reference (tiled)"

    print("KERNEL_OK")
</pallas_src>

<mosaic_0001>
module attributes {stable_mosaic.version = 11 : i64} {
  func.func @_pe_add_kernel(%arg0: i32, %arg1: i32, %arg2: memref<2x256xf32, #tpu.memory_space<vmem>>, %arg3: memref<1x256xf32, #tpu.memory_space<vmem>>, %arg4: memref<2x256xf32, #tpu.memory_space<vmem>>) attributes {dimension_semantics = [#tpu.dimension_semantics<parallel>, #tpu.dimension_semantics<parallel>], iteration_bounds = array<i64: 1, 1>, scalar_prefetch = 0 : i64, scratch_operands = 0 : i64, tpu.core_type = #tpu.core_type<tc>, window_params = [{transform_indices = @transform_0, window_bounds = array<i64: 2, 256>}, {transform_indices = @transform_1, window_bounds = array<i64: 1, 256>}, {transform_indices = @transform_2, window_bounds = array<i64: 2, 256>}]} {
    %c0 = arith.constant 0 : index
    %c0_0 = arith.constant 0 : index
    %0 = vector.load %arg2[%c0, %c0_0] : memref<2x256xf32, #tpu.memory_space<vmem>>, vector<2x256xf32>
    %c0_1 = arith.constant 0 : index
    %c0_2 = arith.constant 0 : index
    %1 = vector.load %arg3[%c0_1, %c0_2] : memref<1x256xf32, #tpu.memory_space<vmem>>, vector<1x256xf32>
    %2 = vector.broadcast %1 : vector<1x256xf32> to vector<2x256xf32>
    %3 = arith.addf %0, %2 : vector<2x256xf32>
    %c0_3 = arith.constant 0 : index
    %c0_4 = arith.constant 0 : index
    %4 = vector.load %arg4[%c0_3, %c0_4] : memref<2x256xf32, #tpu.memory_space<vmem>>, vector<2x256xf32>
    tpu.vector_store %arg4[%c0_3, %c0_4], %3 {strides = array<i32>} : memref<2x256xf32, #tpu.memory_space<vmem>>, vector<2x256xf32>,
    return
  }
  func.func @transform_0(%arg0: i32, %arg1: i32) -> (i32, i32) {
    %c0_i32 = arith.constant 0 : i32
    return %arg1, %arg0 : i32, i32
  }
  func.func @transform_1(%arg0: i32, %arg1: i32) -> (i32, i32) {
    %c0_i32 = arith.constant 0 : i32
    %c0_i32_0 = arith.constant 0 : i32
    return %c0_i32, %arg0 : i32, i32
  }
  func.func @transform_2(%arg0: i32, %arg1: i32) -> (i32, i32) {
    %c0_i32 = arith.constant 0 : i32
    return %arg1, %arg0 : i32, i32
  }
}

</mosaic_0001>

<llo_original>
// kernel: tpu_custom_call.1
$region0: #{tpu_custom_call.1}
  #allocation0 [shape = 'u32[]', space=smem, size = 0x4, offset = 0x4, fixed_abs, tag = 'smem constant byte address 0x4 - core index']
  #allocation1 [shape = 'u32[144,128]{1,0:T(1,128)}', space=vmem, size = 0x12000, scoped, tag = 'internal scratch']
  %s0 = inlined_call_operand.hbm [shape: f32[2,256], index: 0, kind: input, shape index: {}]
  %s1 = inlined_call_operand.hbm [shape: f32[1,256], index: 1, kind: input, shape index: {}]
  %s2 = inlined_call_operand.hbm [shape: f32[2,256], index: 2, kind: output, shape index: {}]
  %s3 = sld [smem:[#allocation0]]
  $region26: #{tpu_custom_call.1} parent=0
    _
  %s5 = ssub.s32 1, %s3
  %s6 = scalar_select 0, %s5, %s3
  $region1: #{tpu_custom_call.1} parent=0
    #allocation2 [shape = 'u8[2048]{0}', space=vmem, size = 0x800, scoped, tag = 'input window, operand 0, single buffered']
    #allocation3 [shape = 's32[1]{0}', space=sflag, size = 0x4, scoped, tag = 'scoped memory for tpu_custom_call.1']
    #allocation4 [shape = 's32[1]{0}', space=sflag, size = 0x4, scoped, tag = 'scoped memory for tpu_custom_call.1']
    #allocation5 [shape = 'u8[1024]{0}', space=vmem, size = 0x400, scoped, tag = 'input window, operand 1, single buffered']
    #allocation6 [shape = 's32[1]{0}', space=sflag, size = 0x4, scoped, tag = 'scoped memory for tpu_custom_call.1']
    #allocation7 [shape = 'u8[2048]{0}', space=vmem, size = 0x800, scoped, tag = 'output window, operand 0, single buffered']
    %7 = vsyncpa [#allocation3], 0
    %8 = vsyncpa [#allocation6], 0
    %9 = vsyncpa [#allocation4], 0
    // Predicated region
    $region2: #{tpu_custom_call.1} parent=1 // pred_check
      _
    $region3: #{tpu_custom_call.1} parent=1 // pred_check_branch
      %11 = sbr.rel (0) target = $region5
    $region4: #{tpu_custom_call.1} parent=1 // pred_region
      %s13 = ssub.s32 64, 64
      %14 = vsyncadd [#allocation3], %s13
      %s16 = sshll.u32 [#allocation2], 4
      %s17 = int_to_ptr.vmem [resolvable:$true] %s16
      %19 = dma.hbm_to_vmem [thread:$0]  %s0, 64, %s17, [#allocation3]
    $region5: #{tpu_custom_call.1} parent=1 // pred_fallthru
      _
    // Predicated region
    $region6: #{tpu_custom_call.1} parent=1 // pred_check
      _
    $region7: #{tpu_custom_call.1} parent=1 // pred_check_branch
      %21 = sbr.rel (0) target = $region9
    $region8: #{tpu_custom_call.1} parent=1 // pred_region
      %s23 = ssub.s32 32, 32
      %24 = vsyncadd [#allocation6], %s23
      %s26 = sshll.u32 [#allocation5], 4
      %s27 = int_to_ptr.vmem [resolvable:$true] %s26
      %29 = dma.hbm_to_vmem [thread:$0]  %s1, 32, %s27, [#allocation6]
    $region9: #{tpu_custom_call.1} parent=1 // pred_fallthru
      _
    // Predicated region
    $region10: #{tpu_custom_call.1} parent=1 // pred_check
      _
    $region11: #{tpu_custom_call.1} parent=1 // pred_check_branch
      %31 = sbr.rel (0) target = $region13
    $region12: #{tpu_custom_call.1} parent=1 // pred_region
      %32 = dma.done [#allocation3], 64
    $region13: #{tpu_custom_call.1} parent=1 // pred_fallthru
      _
    // Predicated region
    $region14: #{tpu_custom_call.1} parent=1 // pred_check
      _
    $region15: #{tpu_custom_call.1} parent=1 // pred_check_branch
      %34 = sbr.rel (0) target = $region17
    $region16: #{tpu_custom_call.1} parent=1 // pred_region
      %35 = dma.done [#allocation6], 32
    $region17: #{tpu_custom_call.1} parent=1 // pred_fallthru
      _
    %v36 = vld [vmem:[#allocation2] sm:$0xf]
    %v37 = vld [vmem:[#allocation5] sm:$0x3]
    %v39 = vlaneseq
    %v40 = vshrl.u32 %v39, 7
    %v41 = vsub.s32 0, %v40
    %v42 = vrot.slane %v37, %v41
    %v43 = vlaneseq
    %v44 = vshrl.u32 %v43, 7
    %v45 = vsub.s32 1, %v44
    %v46 = vrot.slane %v37, %v45
    %v47 = vcombine.low %v42, %v46
    %v49 = vunpack.c.l.s4 1983009808
    %v50 = vunpack.c.0.s8 %v49
    %v51 = vlaneseq
    %v52 = vshrl.u32 %v51, 7
    %v53 = vsub.s32 %v50, %v52
    %v54 = vrot.slane %v47, %v53
    %v56 = vadd.f32 %v36, %v54
    %57 = vst [vmem:[#allocation7] sm:$0xf] %v56
    // Predicated region
    $region18: #{tpu_custom_call.1} parent=1 // pred_check
      _
    $region19: #{tpu_custom_call.1} parent=1 // pred_check_branch
      %59 = sbr.rel (0) target = $region21
    $region20: #{tpu_custom_call.1} parent=1 // pred_region
      %s61 = ssub.s32 64, 64
      %62 = vsyncadd [#allocation4], %s61
      %s64 = sshll.u32 [#allocation7], 4
      %s65 = int_to_ptr.vmem [resolvable:$true] %s64
      %67 = dma.vmem_to_hbm [thread:$0]  %s65, 64, %s2, [#allocation4]
    $region21: #{tpu_custom_call.1} parent=1 // pred_fallthru
      _
    // Predicated region
    $region22: #{tpu_custom_call.1} parent=1 // pred_check
      _
    $region23: #{tpu_custom_call.1} parent=1 // pred_check_branch
      %69 = sbr.rel (0) target = $region25
    $region24: #{tpu_custom_call.1} parent=1 // pred_region
      %70 = dma.done [#allocation4], 64
    $region25: #{tpu_custom_call.1} parent=1 // pred_fallthru
      _
    %71 = vsyncpa [#allocation3], 1
    %72 = vsyncpa [#allocation6], 1
    %73 = vsyncpa [#allocation4], 1

</llo_original>
